<compile_context>
chip_gen: v6e
topology: v6e:2x2x1
jax: 0.10.0
libtpu: 0.0.40
codegen_flags: <defaults>
</compile_context>

<pallas_src>
import functools

import jax
import jax.numpy as jnp
from jax.experimental import pallas as pl
from jax.experimental.pallas import tpu as pltpu


def _linear_kernel(x_ref, wt_ref, b_ref, o_ref):
    # x_ref: (tm, K)  wt_ref: (K, Np)  b_ref: (1, Np)  o_ref: (tm, Np)
    acc = jnp.dot(x_ref[...], wt_ref[...], preferred_element_type=jnp.float32)
    o_ref[...] = (acc + b_ref[...].astype(jnp.float32)).astype(o_ref.dtype)


def _round_up(x, m):
    return ((x + m - 1) // m) * m


def _choose_block_m(m_pad, k, n_pad, in_bytes, vmem_budget):
    """Largest power-of-two tile of M whose double-buffered working set fits."""
    tm = 512
    def working_set(t):
        x_b = 2 * t * k * in_bytes          # x tile, double buffered
        o_b = 2 * t * n_pad * 4             # f32 output tile, double buffered
        w_b = 2 * k * n_pad * in_bytes      # resident weight (double buffered)
        b_b = 2 * n_pad * 4
        return x_b + o_b + w_b + b_b
    while tm > 8 and working_set(tm) > vmem_budget:
        tm //= 2
    return min(tm, m_pad)


@functools.partial(jax.jit, static_argnames=("use_bf16",))
def linear_regression_forward(features, weight, bias, use_bf16=False):
    """features: (M, K) f32, weight: (N, K) f32 (PyTorch layout), bias: (N,) f32."""
    M, K = features.shape
    N, K2 = weight.shape
    assert K == K2, "feature dim mismatch"

    # ---- layout prep in the wrapper (one-time) -----------------------------
    w_t = weight.T                                   # (K, N): MXU-natural layout
    N_pad = _round_up(max(N, 128), 128)              # lane-dense output
    if N_pad != N:
        w_t = jnp.pad(w_t, ((0, 0), (0, N_pad - N)))
        bias = jnp.pad(bias, (0, N_pad - N))
    bias2d = bias.reshape(1, N_pad)

    x = features
    if use_bf16:                                     # v5e: MXU has no native f32 path
        x = x.astype(jnp.bfloat16)
        w_t = w_t.astype(jnp.bfloat16)
    in_bytes = 2 if use_bf16 else 4

    # Conservative VMEM budget (v7x: 64 MiB physical / 32 MiB default scoped).
    vmem_budget = 24 * 1024 * 1024
    M8 = _round_up(M, 8)
    tm = _choose_block_m(M8, K, N_pad, in_bytes, vmem_budget)
    M_pad = _round_up(M, tm)
    if M_pad != M:
        x = jnp.pad(x, ((0, M_pad - M), (0, 0)))
    num_blocks = M_pad // tm

    out_shape = jax.ShapeDtypeStruct((M_pad, N_pad), features.dtype)

    if num_blocks == 1:
        # Tiny problem: skip the grid / pipeline scaffolding entirely.
        out_padded = pl.pallas_call(
            _linear_kernel,
            out_shape=out_shape,
            in_specs=[
                pl.BlockSpec(memory_space=pltpu.VMEM),
                pl.BlockSpec(memory_space=pltpu.VMEM),
                pl.BlockSpec(memory_space=pltpu.VMEM),
            ],
            out_specs=pl.BlockSpec(memory_space=pltpu.VMEM),
        )(x, w_t, bias2d)
    else:
        # Stream x / output over M; weight and bias stay VMEM-resident.
        out_padded = pl.pallas_call(
            _linear_kernel,
            out_shape=out_shape,
            grid=(num_blocks,),
            in_specs=[
                pl.BlockSpec((tm, K), lambda i: (i, 0)),
                pl.BlockSpec((K, N_pad), lambda i: (0, 0)),
                pl.BlockSpec((1, N_pad), lambda i: (0, 0)),
            ],
            out_specs=pl.BlockSpec((tm, N_pad), lambda i: (i, 0)),
            compiler_params=pltpu.CompilerParams(
                dimension_semantics=("parallel",),   # v7x: split M across both TCs
                vmem_limit_bytes=32 * 1024 * 1024,
            ),
        )(x, w_t, bias2d)

    return out_padded[:M, :N]


if __name__ == "__main__":
    key = jax.random.PRNGKey(0)
    kx, kw, kb, kx2 = jax.random.split(key, 4)

    # Module config: num_features=32, "batch_size" ctor arg -> out_features=8.
    num_features = 32
    out_features = 8
    batch = 2

    bound = 1.0 / jnp.sqrt(jnp.float32(num_features))
    weight = jax.random.uniform(
        kw, (out_features, num_features), jnp.float32, -bound, bound
    )
    bias = jax.random.uniform(kb, (out_features,), jnp.float32, -bound, bound)
    features = jax.random.normal(kx, (batch, num_features), jnp.float32)

    # Small (gridless) path.
    out = linear_regression_forward(features, weight, bias)
    out = jax.block_until_ready(out)
    ref = features @ weight.T + bias
    assert out.shape == (batch, out_features)
    assert jnp.allclose(out, ref, atol=1e-5, rtol=1e-5)

    # Larger batch exercises the tiled (grid over M, "parallel") path.
    big_features = jax.random.normal(kx2, (1024, num_features), jnp.float32)
    big_out = linear_regression_forward(big_features, weight, bias)
    big_out = jax.block_until_ready(big_out)
    big_ref = big_features @ weight.T + bias
    assert big_out.shape == (1024, out_features)
    assert jnp.allclose(big_out, big_ref, atol=1e-5, rtol=1e-5)

    print("KERNEL_OK")
</pallas_src>

<mosaic_0001>
module attributes {stable_mosaic.version = 11 : i64} {
  func.func @_linear_kernel(%arg0: memref<8x32xf32, #tpu.memory_space<vmem>>, %arg1: memref<32x128xf32, #tpu.memory_space<vmem>>, %arg2: memref<1x128xf32, #tpu.memory_space<vmem>>, %arg3: memref<8x128xf32, #tpu.memory_space<vmem>>) attributes {dimension_semantics = [], scalar_prefetch = 0 : i64, scratch_operands = 0 : i64, tpu.core_type = #tpu.core_type<tc>} {
    %c0 = arith.constant 0 : index
    %c0_0 = arith.constant 0 : index
    %0 = vector.load %arg0[%c0, %c0_0] : memref<8x32xf32, #tpu.memory_space<vmem>>, vector<8x32xf32>
    %c0_1 = arith.constant 0 : index
    %c0_2 = arith.constant 0 : index
    %1 = vector.load %arg1[%c0_1, %c0_2] : memref<32x128xf32, #tpu.memory_space<vmem>>, vector<32x128xf32>
    %cst = arith.constant dense<0.000000e+00> : vector<8x128xf32>
    %2 = tpu.matmul %0, %1, %cst {dimension_numbers = #tpu.dot_dimension_numbers<[1], [0], [0], [1], [0, 0, 1, 1], [], []>} : vector<8x32xf32>, vector<32x128xf32>, vector<8x128xf32> -> vector<8x128xf32>
    %c0_3 = arith.constant 0 : index
    %c0_4 = arith.constant 0 : index
    %3 = vector.load %arg2[%c0_3, %c0_4] : memref<1x128xf32, #tpu.memory_space<vmem>>, vector<1x128xf32>
    %4 = vector.broadcast %3 : vector<1x128xf32> to vector<8x128xf32>
    %5 = arith.addf %2, %4 : vector<8x128xf32>
    %c0_5 = arith.constant 0 : index
    %c0_6 = arith.constant 0 : index
    %6 = vector.load %arg3[%c0_5, %c0_6] : memref<8x128xf32, #tpu.memory_space<vmem>>, vector<8x128xf32>
    tpu.vector_store %arg3[%c0_5, %c0_6], %5 {strides = array<i32>} : memref<8x128xf32, #tpu.memory_space<vmem>>, vector<8x128xf32>,
    return
  }
}

</mosaic_0001>

<llo_original>
// kernel: linear_regression_forward.1
$region0: #{linear_regression_forward.1}
  #allocation0 [shape = 'u32[]', space=smem, size = 0x4, offset = 0x4, fixed_abs, tag = 'smem constant byte address 0x4 - core index']
  #allocation1 [shape = 'u32[144,128]{1,0:T(1,128)}', space=vmem, size = 0x12000, scoped, tag = 'internal scratch']
  %s0 = inlined_call_operand.vmem [shape: f32[8,32], index: 0, kind: input, shape index: {}]
  %s1 = inlined_call_operand.vmem [shape: f32[32,128], index: 1, kind: input, shape index: {}]
  %s2 = inlined_call_operand.vmem [shape: f32[1,128], index: 2, kind: input, shape index: {}]
  %s3 = inlined_call_operand.vmem [shape: f32[8,128], index: 3, kind: output, shape index: {}]
  %s4 = sld [smem:[#allocation0]]
  $region22: #{linear_regression_forward.1} parent=0
    _
  %s6 = ssub.s32 1, %s4
  %s7 = scalar_select 0, %s6, %s4
  // Predicated region
  $region2: #{linear_regression_forward.1} parent=0 // pred_check
    _
  $region3: #{linear_regression_forward.1} parent=0 // pred_check_branch
    %9 = sbr.rel (0) target = $region5
  $region4: #{linear_regression_forward.1} parent=0 // pred_region
    _
  $region5: #{linear_regression_forward.1} parent=0 // pred_fallthru
    _
  // Predicated region
  $region6: #{linear_regression_forward.1} parent=0 // pred_check
    _
  $region7: #{linear_regression_forward.1} parent=0 // pred_check_branch
    %11 = sbr.rel (0) target = $region9
  $region8: #{linear_regression_forward.1} parent=0 // pred_region
    _
  $region9: #{linear_regression_forward.1} parent=0 // pred_fallthru
    _
  // Predicated region
  $region10: #{linear_regression_forward.1} parent=0 // pred_check
    _
  $region11: #{linear_regression_forward.1} parent=0 // pred_check_branch
    %13 = sbr.rel (0) target = $region13
  $region12: #{linear_regression_forward.1} parent=0 // pred_region
    _
  $region13: #{linear_regression_forward.1} parent=0 // pred_fallthru
    _
  %v14 = vld [vmem:[%s0] sm:$0xff]
  %v15 = vld [vmem:[%s1] sm:$0xff]
  %v16 = vld [vmem:[%s1 + $0x8] sm:$0xff]
  %v17 = vld [vmem:[%s1 + $0x10] sm:$0xff]
  %v18 = vld [vmem:[%s1 + $0x18] sm:$0xff]
  %v19 = vld [vmem:[%s2] sm:$0x1]
  %v21 = vlaneseq
  %v22 = vshrl.u32 %v21, 7
  %v23 = vsub.s32 0, %v22
  %v24 = vrot.slane %v19, %v23
  %vm26 = vcmask 261120
  %v28 = vsel %vm26, %v14, 0
  %30 = vmatprep.subr.mxu0 0.0
  %31 = vmatpush1.msra.mxu0 0.0
  %32 = vmatprep.subr.mxu0 0.0
  %33 = vmatpush1.msra.mxu0 0.0
  %34 = vmatprep.subr.mxu0 0.0
  %35 = vmatpush1.msra.mxu0 0.0
  %36 = vmatprep.subr.mxu0 0.0
  %37 = vmatpush1.msra.mxu0 0.0
  %38 = vmatprep.subr.mxu0 0.0
  %39 = vmatpush1.msra.mxu0 0.0
  %40 = vmatprep.subr.mxu0 0.0
  %41 = vmatpush1.msra.mxu0 0.0
  %42 = vmatprep.subr.mxu0 0.0
  %43 = vmatpush1.msra.mxu0 0.0
  %44 = vmatprep.subr.mxu0 0.0
  %45 = vmatpush1.msra.mxu0 0.0
  %46 = vmatprep.subr.mxu0 0.0
  %47 = vmatpush1.msra.mxu0 0.0
  %48 = vmatprep.subr.mxu0 0.0
  %49 = vmatpush1.msra.mxu0 0.0
  %50 = vmatprep.subr.mxu0 0.0
  %51 = vmatpush1.msra.mxu0 0.0
  %52 = vmatprep.subr.mxu0 0.0
  %53 = vmatpush1.msra.mxu0 0.0
  %54 = vmatprep.subr.mxu0 0.0
  %55 = vmatpush1.msra.mxu0 %v18
  %56 = vmatprep.subr.mxu0 0.0
  %57 = vmatpush1.msra.mxu0 %v17
  %58 = vmatprep.subr.mxu0 0.0
  %59 = vmatpush1.msra.mxu0 %v16
  %60 = vmatprep.subr.mxu0 0.0
  %61 = vmatpush1.msra.mxu0 %v15
  %62 = vmatprep.subr.mxu0 0.0
  %63 = vmatpush2.msra.mxu0 0.0
  %64 = vmatprep.subr.mxu0 0.0
  %65 = vmatpush2.msra.mxu0 0.0
  %66 = vmatprep.subr.mxu0 0.0
  %67 = vmatpush2.msra.mxu0 0.0
  %68 = vmatprep.subr.mxu0 0.0
  %69 = vmatpush2.msra.mxu0 0.0
  %70 = vmatprep.subr.mxu0 0.0
  %71 = vmatpush2.msra.mxu0 0.0
  %72 = vmatprep.subr.mxu0 0.0
  %73 = vmatpush2.msra.mxu0 0.0
  %74 = vmatprep.subr.mxu0 0.0
  %75 = vmatpush2.msra.mxu0 0.0
  %76 = vmatprep.subr.mxu0 0.0
  %77 = vmatpush2.msra.mxu0 0.0
  %78 = vmatprep.subr.mxu0 0.0
  %79 = vmatpush2.msra.mxu0 0.0
  %80 = vmatprep.subr.mxu0 0.0
  %81 = vmatpush2.msra.mxu0 0.0
  %82 = vmatprep.subr.mxu0 0.0
  %83 = vmatpush2.msra.mxu0 0.0
  %84 = vmatprep.subr.mxu0 0.0
  %85 = vmatpush2.msra.mxu0 0.0
  %86 = vmatprep.subr.mxu0 0.0
  %87 = vmatpush2.msra.mxu0 0.0
  %88 = vmatprep.subr.mxu0 0.0
  %89 = vmatpush2.msra.mxu0 0.0
  %90 = vmatprep.subr.mxu0 0.0
  %91 = vmatpush2.msra.mxu0 0.0
  %92 = vmatprep.subr.mxu0 0.0
  %93 = vmatpush2.msra.mxu0 0.0
  %94 = vmatprep.mubr.f32.mxu0 0.0
  %95 = vmatmul.mubr.f32.gmra.mxu0 %v28
  %v96 = vpop.f32.mrf.mxu0
  %v97 = vadd.f32 %v24, %v96
  %v98 = vpop.f32.mrf.mxu0
  %99 = vdwg.mxu0
  %100 = vst [vmem:[%s3] sm:$0xff] %v97
  // Predicated region
  $region14: #{linear_regression_forward.1} parent=0 // pred_check
    _
  $region15: #{linear_regression_forward.1} parent=0 // pred_check_branch
    %102 = sbr.rel (0) target = $region17
  $region16: #{linear_regression_forward.1} parent=0 // pred_region
    _
  $region17: #{linear_regression_forward.1} parent=0 // pred_fallthru
    _
  // Predicated region
  $region18: #{linear_regression_forward.1} parent=0 // pred_check
    _
  $region19: #{linear_regression_forward.1} parent=0 // pred_check_branch
    %104 = sbr.rel (0) target = $region21
  $region20: #{linear_regression_forward.1} parent=0 // pred_region
    _
  $region21: #{linear_regression_forward.1} parent=0 // pred_fallthru
    _

</llo_original>
